<compile_context>
chip_gen: v7x
topology: tpu7x:2x2x1
jax: 0.10.0
libtpu: 0.0.40
codegen_flags: <defaults>
</compile_context>

<pallas_src>
import functools

import jax
import jax.numpy as jnp
from jax.experimental import pallas as pl
from jax.experimental.pallas import tpu as pltpu

IN_DIM = 14          # real input features
IN_PAD = 16          # padded K for layer 0
HIDDEN = 256
OUT_DIM = 1          # real output width
OUT_PAD = 128        # lane-dense padded output width
NEG_SLOPE = 0.01     # nn.LeakyReLU default
LAYER_OUT = (HIDDEN, HIDDEN, HIDDEN, HIDDEN, HIDDEN, OUT_PAD)


def _leaky_relu(x):
    # max-form: mul + max (2 VPU ops) vs where's cmp + mul + select (3 ops)
    return jnp.maximum(x, NEG_SLOPE * x)


def _round_up(x, m):
    return ((x + m - 1) // m) * m


def _default_bf16_epilogue():
    """bf16 VPU epilogue only on chips with a bf16 vector datapath (v6e+/v7x)."""
    try:
        kind = jax.devices()[0].device_kind.lower()
    except Exception:
        return True
    for old in ("v2", "v3", "v4", "v5"):
        if old in kind:
            return False
    return True


# ----------------------------- kernel ---------------------------------------
def bp_kernel(x_ref, w0, w1, w2, w3, w4, w5, bias_ref, o_ref, *, bf16_epilogue):
    """One batch tile through all 6 layers. Weights bf16, MXU f32 accumulation."""
    w_refs = (w0, w1, w2, w3, w4, w5)
    n = len(w_refs)
    h = x_ref[...]                                             # bf16 (tb, IN_PAD)
    for i in range(n):
        acc = jnp.dot(h, w_refs[i][...],
                      preferred_element_type=jnp.float32)       # MXU, f32 acc
        last = (i == n - 1)
        b_row = bias_ref[i:i + 1, :LAYER_OUT[i]]                # (1, width) f32
        if bf16_epilogue and not last:
            a = acc.astype(jnp.bfloat16) + b_row.astype(jnp.bfloat16)
            h = _leaky_relu(a)                                  # bf16 epilogue
        else:
            a = acc + b_row                                     # f32 epilogue
            a = _leaky_relu(a)
            h = a if last else a.astype(jnp.bfloat16)
    o_ref[...] = h.astype(o_ref.dtype)                          # bf16 (tb, OUT_PAD)


# ----------------------------- wrapper ---------------------------------------
def pack_params(params):
    """Flat f32 param list [W0,b0,...,W5,b5] (W as (in,out), b as (1,out)/(out,))
    -> padded bf16 weights + packed f32 bias buffer (8, 256)."""
    ws, bs = [], []
    for i in range(6):
        ws.append(jnp.asarray(params[2 * i], jnp.float32))
        bs.append(jnp.asarray(params[2 * i + 1], jnp.float32).reshape(-1))

    w0 = jnp.pad(ws[0], ((0, IN_PAD - ws[0].shape[0]), (0, 0)))     # (16, 256)
    w5 = jnp.pad(ws[5], ((0, 0), (0, OUT_PAD - ws[5].shape[1])))    # (256, 128)
    b5 = jnp.pad(bs[5], (0, OUT_PAD - bs[5].shape[0]))              # (128,)

    w_list = [w0, ws[1], ws[2], ws[3], ws[4], w5]
    w_list = [w.astype(jnp.bfloat16) for w in w_list]

    bias = jnp.zeros((8, HIDDEN), jnp.float32)
    for i in range(5):
        bias = bias.at[i, :bs[i].shape[0]].set(bs[i])
    bias = bias.at[5, :OUT_PAD].set(b5)
    return w_list, bias


@functools.partial(jax.jit, static_argnames=("tile_b", "bf16_epilogue"))
def bp_forward(x, w_list, bias, tile_b=2048, bf16_epilogue=True):
    """x: (B, 14) f32. Returns (B, 1) f32."""
    B = x.shape[0]
    tb = min(tile_b, _round_up(max(B, 8), 8))
    # keep >= 2 grid steps when the batch allows it (v7x has 2 TensorCores)
    half = _round_up(max((B + 1) // 2, 8), 8)
    tb = max(8, min(tb, half))
    B_pad = _round_up(B, tb)
    grid = (B_pad // tb,)

    x_pad = jnp.pad(x.astype(jnp.float32),
                    ((0, B_pad - B), (0, IN_PAD - x.shape[1]))).astype(jnp.bfloat16)

    in_specs = [pl.BlockSpec((tb, IN_PAD), lambda i: (i, 0))]           # x tile (bf16)
    in_specs += [pl.BlockSpec((IN_PAD, HIDDEN), lambda i: (0, 0))]      # W0
    in_specs += [pl.BlockSpec((HIDDEN, HIDDEN), lambda i: (0, 0))] * 4  # W1..W4
    in_specs += [pl.BlockSpec((HIDDEN, OUT_PAD), lambda i: (0, 0))]     # W5
    in_specs += [pl.BlockSpec((8, HIDDEN), lambda i: (0, 0))]           # biases (f32)
    out_spec = pl.BlockSpec((tb, OUT_PAD), lambda i: (i, 0))

    flops = 2 * B_pad * (IN_PAD * HIDDEN + 4 * HIDDEN * HIDDEN
                         + HIDDEN * OUT_PAD)
    bytes_accessed = (x_pad.size * 2                           # bf16 input
                      + sum(int(w.size) for w in w_list) * 2   # bf16 weights
                      + bias.size * 4                          # f32 biases
                      + B_pad * OUT_PAD * 2)                   # bf16 output

    kernel = functools.partial(bp_kernel, bf16_epilogue=bf16_epilogue)
    out = pl.pallas_call(
        kernel,
        out_shape=jax.ShapeDtypeStruct((B_pad, OUT_PAD), jnp.bfloat16),
        grid=grid,
        in_specs=in_specs,
        out_specs=out_spec,
        compiler_params=pltpu.CompilerParams(
            dimension_semantics=("parallel",),
            vmem_limit_bytes=32 * 1024 * 1024,
        ),
        cost_estimate=pl.CostEstimate(
            flops=flops, transcendentals=0, bytes_accessed=bytes_accessed),
    )(x_pad, *w_list, bias)
    return out[:B, :OUT_DIM].astype(jnp.float32)


# ----------------------------- reference / init ------------------------------
def init_params(key):
    """Deterministic init mimicking PyTorch nn.Linear default (U[-1/sqrt(fan_in), +])."""
    dims = [IN_DIM] + [HIDDEN] * 5 + [OUT_DIM]
    params = []
    for i in range(len(dims) - 1):
        fan_in, fan_out = dims[i], dims[i + 1]
        key, kw, kb = jax.random.split(key, 3)
        bound = 1.0 / jnp.sqrt(fan_in)
        w = jax.random.uniform(kw, (fan_in, fan_out), jnp.float32, -bound, bound)
        b = jax.random.uniform(kb, (1, fan_out), jnp.float32, -bound, bound)
        params += [w, b]
    return params


def bp_reference_kernel_precision(x, params, bf16_epilogue):
    """Pure-JAX reference mirroring the kernel's precision scheme exactly."""
    n = len(params) // 2
    h = jnp.asarray(x, jnp.float32).astype(jnp.bfloat16)
    for i in range(n):
        w = jnp.asarray(params[2 * i], jnp.float32).astype(jnp.bfloat16)
        b = jnp.asarray(params[2 * i + 1], jnp.float32).reshape(1, -1)
        acc = jnp.dot(h, w, preferred_element_type=jnp.float32)
        last = (i == n - 1)
        if bf16_epilogue and not last:
            a = acc.astype(jnp.bfloat16) + b.astype(jnp.bfloat16)
            h = _leaky_relu(a)
        else:
            a = _leaky_relu(acc + b)
            h = a if last else a.astype(jnp.bfloat16)
    # kernel stores the final tile as bf16
    return h.astype(jnp.bfloat16).astype(jnp.float32)


def bp_reference_f32(x, params):
    """Full-f32 reference of the PyTorch module (loose sanity check)."""
    h = jnp.asarray(x, jnp.float32)
    for i in range(len(params) // 2):
        w = jnp.asarray(params[2 * i], jnp.float32)
        b = jnp.asarray(params[2 * i + 1], jnp.float32).reshape(1, -1)
        h = _leaky_relu(jnp.dot(h, w) + b)
    return h


if __name__ == "__main__":
    key = jax.random.PRNGKey(0)
    key, kx = jax.random.split(key)
    B = 8
    x = jax.random.normal(kx, (B, IN_DIM), jnp.float32)
    params = init_params(key)

    bf16_ep = _default_bf16_epilogue()
    w_list, bias = pack_params(params)
    out = bp_forward(x, w_list, bias, bf16_epilogue=bf16_ep)
    out = jax.block_until_ready(out)

    ref_kp = bp_reference_kernel_precision(x, params, bf16_ep)
    ref_f32 = bp_reference_f32(x, params)

    assert out.shape == (B, OUT_DIM)
    assert bool(jnp.all(jnp.isfinite(out)))
    assert jnp.allclose(out, ref_kp[:, :OUT_DIM], atol=2e-3, rtol=2e-2), \
        "mismatch vs kernel-precision reference"
    assert jnp.allclose(out, ref_f32[:, :OUT_DIM], atol=5e-2, rtol=5e-2), \
        "mismatch vs f32 reference"
    print("KERNEL_OK")
</pallas_src>

<mosaic_0001>
module attributes {stable_mosaic.version = 11 : i64} {
  func.func @bp_kernel(%arg0: i32, %arg1: memref<8x16xbf16, #tpu.memory_space<vmem>>, %arg2: memref<16x256xbf16, #tpu.memory_space<vmem>>, %arg3: memref<256x256xbf16, #tpu.memory_space<vmem>>, %arg4: memref<256x256xbf16, #tpu.memory_space<vmem>>, %arg5: memref<256x256xbf16, #tpu.memory_space<vmem>>, %arg6: memref<256x256xbf16, #tpu.memory_space<vmem>>, %arg7: memref<256x128xbf16, #tpu.memory_space<vmem>>, %arg8: memref<8x256xf32, #tpu.memory_space<vmem>>, %arg9: memref<8x128xbf16, #tpu.memory_space<vmem>>) attributes {dimension_semantics = [#tpu.dimension_semantics<parallel>], iteration_bounds = array<i64: 1>, scalar_prefetch = 0 : i64, scratch_operands = 0 : i64, tpu.core_type = #tpu.core_type<tc>, window_params = [{transform_indices = @transform_0, window_bounds = array<i64: 8, 16>}, {pipeline_mode = #tpu.pipeline_mode<synchronous>, transform_indices = @transform_1, window_bounds = array<i64: 16, 256>}, {pipeline_mode = #tpu.pipeline_mode<synchronous>, transform_indices = @transform_2, window_bounds = array<i64: 256, 256>}, {pipeline_mode = #tpu.pipeline_mode<synchronous>, transform_indices = @transform_3, window_bounds = array<i64: 256, 256>}, {pipeline_mode = #tpu.pipeline_mode<synchronous>, transform_indices = @transform_4, window_bounds = array<i64: 256, 256>}, {pipeline_mode = #tpu.pipeline_mode<synchronous>, transform_indices = @transform_5, window_bounds = array<i64: 256, 256>}, {pipeline_mode = #tpu.pipeline_mode<synchronous>, transform_indices = @transform_6, window_bounds = array<i64: 256, 128>}, {pipeline_mode = #tpu.pipeline_mode<synchronous>, transform_indices = @transform_7, window_bounds = array<i64: 8, 256>}, {transform_indices = @transform_8, window_bounds = array<i64: 8, 128>}]} {
    %c0 = arith.constant 0 : index
    %c0_0 = arith.constant 0 : index
    %0 = vector.load %arg1[%c0, %c0_0] : memref<8x16xbf16, #tpu.memory_space<vmem>>, vector<8x16xbf16>
    %c0_1 = arith.constant 0 : index
    %c0_2 = arith.constant 0 : index
    %1 = vector.load %arg2[%c0_1, %c0_2] : memref<16x256xbf16, #tpu.memory_space<vmem>>, vector<16x256xbf16>
    %cst = arith.constant dense<0.000000e+00> : vector<8x256xf32>
    %2 = tpu.matmul %0, %1, %cst {dimension_numbers = #tpu.dot_dimension_numbers<[1], [0], [0], [1], [0, 0, 1, 1], [], []>} : vector<8x16xbf16>, vector<16x256xbf16>, vector<8x256xf32> -> vector<8x256xf32>
    %c0_3 = arith.constant 0 : index
    %c0_4 = arith.constant 0 : index
    %3 = vector.load %arg8[%c0_3, %c0_4] : memref<8x256xf32, #tpu.memory_space<vmem>>, vector<1x256xf32>
    %4 = arith.truncf %2 : vector<8x256xf32> to vector<8x256xbf16>
    %5 = arith.truncf %3 : vector<1x256xf32> to vector<1x256xbf16>
    %6 = vector.broadcast %5 : vector<1x256xbf16> to vector<8x256xbf16>
    %7 = arith.addf %4, %6 : vector<8x256xbf16>
    %cst_5 = arith.constant 1.000980e-02 : bf16
    %8 = vector.broadcast %cst_5 : bf16 to vector<8x256xbf16>
    %9 = arith.mulf %8, %7 : vector<8x256xbf16>
    %10 = arith.maximumf %7, %9 : vector<8x256xbf16>
    %c0_6 = arith.constant 0 : index
    %c0_7 = arith.constant 0 : index
    %11 = vector.load %arg3[%c0_6, %c0_7] : memref<256x256xbf16, #tpu.memory_space<vmem>>, vector<256x256xbf16>
    %cst_8 = arith.constant dense<0.000000e+00> : vector<8x256xf32>
    %12 = tpu.matmul %10, %11, %cst_8 {dimension_numbers = #tpu.dot_dimension_numbers<[1], [0], [0], [1], [0, 0, 1, 1], [], []>} : vector<8x256xbf16>, vector<256x256xbf16>, vector<8x256xf32> -> vector<8x256xf32>
    %c1 = arith.constant 1 : index
    %c0_9 = arith.constant 0 : index
    %13 = vector.load %arg8[%c1, %c0_9] : memref<8x256xf32, #tpu.memory_space<vmem>>, vector<1x256xf32>
    %14 = arith.truncf %12 : vector<8x256xf32> to vector<8x256xbf16>
    %15 = arith.truncf %13 : vector<1x256xf32> to vector<1x256xbf16>
    %16 = vector.broadcast %15 : vector<1x256xbf16> to vector<8x256xbf16>
    %17 = arith.addf %14, %16 : vector<8x256xbf16>
    %cst_10 = arith.constant 1.000980e-02 : bf16
    %18 = vector.broadcast %cst_10 : bf16 to vector<8x256xbf16>
    %19 = arith.mulf %18, %17 : vector<8x256xbf16>
    %20 = arith.maximumf %17, %19 : vector<8x256xbf16>
    %c0_11 = arith.constant 0 : index
    %c0_12 = arith.constant 0 : index
    %21 = vector.load %arg4[%c0_11, %c0_12] : memref<256x256xbf16, #tpu.memory_space<vmem>>, vector<256x256xbf16>
    %cst_13 = arith.constant dense<0.000000e+00> : vector<8x256xf32>
    %22 = tpu.matmul %20, %21, %cst_13 {dimension_numbers = #tpu.dot_dimension_numbers<[1], [0], [0], [1], [0, 0, 1, 1], [], []>} : vector<8x256xbf16>, vector<256x256xbf16>, vector<8x256xf32> -> vector<8x256xf32>
    %c2 = arith.constant 2 : index
    %c0_14 = arith.constant 0 : index
    %23 = vector.load %arg8[%c2, %c0_14] : memref<8x256xf32, #tpu.memory_space<vmem>>, vector<1x256xf32>
    %24 = arith.truncf %22 : vector<8x256xf32> to vector<8x256xbf16>
    %25 = arith.truncf %23 : vector<1x256xf32> to vector<1x256xbf16>
    %26 = vector.broadcast %25 : vector<1x256xbf16> to vector<8x256xbf16>
    %27 = arith.addf %24, %26 : vector<8x256xbf16>
    %cst_15 = arith.constant 1.000980e-02 : bf16
    %28 = vector.broadcast %cst_15 : bf16 to vector<8x256xbf16>
    %29 = arith.mulf %28, %27 : vector<8x256xbf16>
    %30 = arith.maximumf %27, %29 : vector<8x256xbf16>
    %c0_16 = arith.constant 0 : index
    %c0_17 = arith.constant 0 : index
    %31 = vector.load %arg5[%c0_16, %c0_17] : memref<256x256xbf16, #tpu.memory_space<vmem>>, vector<256x256xbf16>
    %cst_18 = arith.constant dense<0.000000e+00> : vector<8x256xf32>
    %32 = tpu.matmul %30, %31, %cst_18 {dimension_numbers = #tpu.dot_dimension_numbers<[1], [0], [0], [1], [0, 0, 1, 1], [], []>} : vector<8x256xbf16>, vector<256x256xbf16>, vector<8x256xf32> -> vector<8x256xf32>
    %c3 = arith.constant 3 : index
    %c0_19 = arith.constant 0 : index
    %33 = vector.load %arg8[%c3, %c0_19] : memref<8x256xf32, #tpu.memory_space<vmem>>, vector<1x256xf32>
    %34 = arith.truncf %32 : vector<8x256xf32> to vector<8x256xbf16>
    %35 = arith.truncf %33 : vector<1x256xf32> to vector<1x256xbf16>
    %36 = vector.broadcast %35 : vector<1x256xbf16> to vector<8x256xbf16>
    %37 = arith.addf %34, %36 : vector<8x256xbf16>
    %cst_20 = arith.constant 1.000980e-02 : bf16
    %38 = vector.broadcast %cst_20 : bf16 to vector<8x256xbf16>
    %39 = arith.mulf %38, %37 : vector<8x256xbf16>
    %40 = arith.maximumf %37, %39 : vector<8x256xbf16>
    %c0_21 = arith.constant 0 : index
    %c0_22 = arith.constant 0 : index
    %41 = vector.load %arg6[%c0_21, %c0_22] : memref<256x256xbf16, #tpu.memory_space<vmem>>, vector<256x256xbf16>
    %cst_23 = arith.constant dense<0.000000e+00> : vector<8x256xf32>
    %42 = tpu.matmul %40, %41, %cst_23 {dimension_numbers = #tpu.dot_dimension_numbers<[1], [0], [0], [1], [0, 0, 1, 1], [], []>} : vector<8x256xbf16>, vector<256x256xbf16>, vector<8x256xf32> -> vector<8x256xf32>
    %c4 = arith.constant 4 : index
    %c0_24 = arith.constant 0 : index
    %43 = vector.load %arg8[%c4, %c0_24] : memref<8x256xf32, #tpu.memory_space<vmem>>, vector<1x256xf32>
    %44 = arith.truncf %42 : vector<8x256xf32> to vector<8x256xbf16>
    %45 = arith.truncf %43 : vector<1x256xf32> to vector<1x256xbf16>
    %46 = vector.broadcast %45 : vector<1x256xbf16> to vector<8x256xbf16>
    %47 = arith.addf %44, %46 : vector<8x256xbf16>
    %cst_25 = arith.constant 1.000980e-02 : bf16
    %48 = vector.broadcast %cst_25 : bf16 to vector<8x256xbf16>
    %49 = arith.mulf %48, %47 : vector<8x256xbf16>
    %50 = arith.maximumf %47, %49 : vector<8x256xbf16>
    %c0_26 = arith.constant 0 : index
    %c0_27 = arith.constant 0 : index
    %51 = vector.load %arg7[%c0_26, %c0_27] : memref<256x128xbf16, #tpu.memory_space<vmem>>, vector<256x128xbf16>
    %cst_28 = arith.constant dense<0.000000e+00> : vector<8x128xf32>
    %52 = tpu.matmul %50, %51, %cst_28 {dimension_numbers = #tpu.dot_dimension_numbers<[1], [0], [0], [1], [0, 0, 1, 1], [], []>} : vector<8x256xbf16>, vector<256x128xbf16>, vector<8x128xf32> -> vector<8x128xf32>
    %c5 = arith.constant 5 : index
    %c0_29 = arith.constant 0 : index
    %53 = vector.load %arg8[%c5, %c0_29] : memref<8x256xf32, #tpu.memory_space<vmem>>, vector<1x128xf32>
    %54 = vector.broadcast %53 : vector<1x128xf32> to vector<8x128xf32>
    %55 = arith.addf %52, %54 : vector<8x128xf32>
    %cst_30 = arith.constant 0.00999999977 : f32
    %56 = vector.broadcast %cst_30 : f32 to vector<8x128xf32>
    %57 = arith.mulf %56, %55 : vector<8x128xf32>
    %58 = arith.maximumf %55, %57 : vector<8x128xf32>
    %59 = arith.truncf %58 : vector<8x128xf32> to vector<8x128xbf16>
    %c0_31 = arith.constant 0 : index
    %c0_32 = arith.constant 0 : index
    %60 = vector.load %arg9[%c0_31, %c0_32] : memref<8x128xbf16, #tpu.memory_space<vmem>>, vector<8x128xbf16>
    tpu.vector_store %arg9[%c0_31, %c0_32], %59 {strides = array<i32>} : memref<8x128xbf16, #tpu.memory_space<vmem>>, vector<8x128xbf16>,
    return
  }
  func.func @transform_0(%arg0: i32) -> (i32, i32) {
    %c0_i32 = arith.constant 0 : i32
    %c0_i32_0 = arith.constant 0 : i32
    return %arg0, %c0_i32 : i32, i32
  }
  func.func @transform_1(%arg0: i32) -> (i32, i32) {
    %c0_i32 = arith.constant 0 : i32
    %c0_i32_0 = arith.constant 0 : i32
    %c0_i32_1 = arith.constant 0 : i32
    return %c0_i32, %c0_i32_0 : i32, i32
  }
  func.func @transform_2(%arg0: i32) -> (i32, i32) {
    %c0_i32 = arith.constant 0 : i32
    %c0_i32_0 = arith.constant 0 : i32
    %c0_i32_1 = arith.constant 0 : i32
    return %c0_i32, %c0_i32_0 : i32, i32
  }
  func.func @transform_3(%arg0: i32) -> (i32, i32) {
    %c0_i32 = arith.constant 0 : i32
    %c0_i32_0 = arith.constant 0 : i32
    %c0_i32_1 = arith.constant 0 : i32
    return %c0_i32, %c0_i32_0 : i32, i32
  }
  func.func @transform_4(%arg0: i32) -> (i32, i32) {
    %c0_i32 = arith.constant 0 : i32
    %c0_i32_0 = arith.constant 0 : i32
    %c0_i32_1 = arith.constant 0 : i32
    return %c0_i32, %c0_i32_0 : i32, i32
  }
  func.func @transform_5(%arg0: i32) -> (i32, i32) {
    %c0_i32 = arith.constant 0 : i32
    %c0_i32_0 = arith.constant 0 : i32
    %c0_i32_1 = arith.constant 0 : i32
    return %c0_i32, %c0_i32_0 : i32, i32
  }
  func.func @transform_6(%arg0: i32) -> (i32, i32) {
    %c0_i32 = arith.constant 0 : i32
    %c0_i32_0 = arith.constant 0 : i32
    %c0_i32_1 = arith.constant 0 : i32
    return %c0_i32, %c0_i32_0 : i32, i32
  }
  func.func @transform_7(%arg0: i32) -> (i32, i32) {
    %c0_i32 = arith.constant 0 : i32
    %c0_i32_0 = arith.constant 0 : i32
    %c0_i32_1 = arith.constant 0 : i32
    return %c0_i32, %c0_i32_0 : i32, i32
  }
  func.func @transform_8(%arg0: i32) -> (i32, i32) {
    %c0_i32 = arith.constant 0 : i32
    %c0_i32_0 = arith.constant 0 : i32
    return %arg0, %c0_i32 : i32, i32
  }
}

</mosaic_0001>

<llo_original>
// kernel: bp_forward.1
$region0: #{bp_forward.1}
  #allocation0 [shape = 'u32[]', space=smem, size = 0x4, offset = 0x4, fixed_abs, tag = 'smem constant byte address 0x4 - core index']
  #allocation1 [shape = 'u32[144,128]{1,0:T(1,128)}', space=vmem, size = 0x12000, scoped, tag = 'internal scratch']
  %s0 = inlined_call_operand.vmem [shape: bf16[8,16], index: 0, kind: input, shape index: {}]
  %s1 = inlined_call_operand.vmem [shape: bf16[16,256], index: 1, kind: input, shape index: {}]
  %s2 = inlined_call_operand.hbm [shape: bf16[256,256], index: 2, kind: input, shape index: {}]
  %s3 = inlined_call_operand.hbm [shape: bf16[256,256], index: 3, kind: input, shape index: {}]
  %s4 = inlined_call_operand.hbm [shape: bf16[256,256], index: 4, kind: input, shape index: {}]
  %s5 = inlined_call_operand.hbm [shape: bf16[256,256], index: 5, kind: input, shape index: {}]
  %s6 = inlined_call_operand.hbm [shape: bf16[256,128], index: 6, kind: input, shape index: {}]
  %s7 = inlined_call_operand.vmem [shape: f32[8,256], index: 7, kind: input, shape index: {}]
  %s8 = inlined_call_operand.vmem [shape: bf16[8,128], index: 8, kind: output, shape index: {}]
  %s9 = sld [smem:[#allocation0]]
  $region62: #{bp_forward.1} parent=0
    _
  %s11 = ssub.s32 1, %s9
  %s12 = scalar_select 0, %s11, %s9
  $region1: #{bp_forward.1} parent=0
    #allocation2 [shape = 'u8[131072]{0}', space=vmem, size = 0x20000, scoped, tag = 'input window, operand 2, single buffered']
    #allocation3 [shape = 's32[1]{0}', space=sflag, size = 0x4, scoped, tag = 'scoped memory for bp_forward.1']
    #allocation4 [shape = 'u8[131072]{0}', space=vmem, size = 0x20000, scoped, tag = 'input window, operand 3, single buffered']
    #allocation5 [shape = 's32[1]{0}', space=sflag, size = 0x4, scoped, tag = 'scoped memory for bp_forward.1']
    #allocation6 [shape = 'u8[131072]{0}', space=vmem, size = 0x20000, scoped, tag = 'input window, operand 4, single buffered']
    #allocation7 [shape = 'u8[131072]{0}', space=vmem, size = 0x20000, scoped, tag = 'input window, operand 5, single buffered']
    #allocation8 [shape = 's32[1]{0}', space=sflag, size = 0x4, scoped, tag = 'scoped memory for bp_forward.1']
    #allocation9 [shape = 'u8[65536]{0}', space=vmem, size = 0x10000, scoped, tag = 'input window, operand 6, single buffered']
    %13 = vsyncpa [#allocation3], 0
    %14 = vsyncpa [#allocation5], 0
    %15 = vsyncpa [#allocation8], 0
    // Predicated region
    $region2: #{bp_forward.1} parent=1 // pred_check
      _
    $region3: #{bp_forward.1} parent=1 // pred_check_branch
      %17 = sbr.rel (0) target = $region5
    $region4: #{bp_forward.1} parent=1 // pred_region
      _
    $region5: #{bp_forward.1} parent=1 // pred_fallthru
      _
    // Predicated region
    $region6: #{bp_forward.1} parent=1 // pred_check
      _
    $region7: #{bp_forward.1} parent=1 // pred_check_branch
      %19 = sbr.rel (0) target = $region9
    $region8: #{bp_forward.1} parent=1 // pred_region
      _
    $region9: #{bp_forward.1} parent=1 // pred_fallthru
      _
    // Predicated region
    $region10: #{bp_forward.1} parent=1 // pred_check
      _
    $region11: #{bp_forward.1} parent=1 // pred_check_branch
      %21 = sbr.rel (0) target = $region13
    $region12: #{bp_forward.1} parent=1 // pred_region
      %s23 = ssub.s32 4096, 4096
      %24 = vsyncadd [#allocation3], %s23
      %s25 = sshll.u32 [#allocation2], 4
      %s26 = int_to_ptr.vmem [resolvable:$true] %s25
      %31 = dma.hbm_to_vmem [thread:$0]  %s2, 4096, %s26, [#allocation3], 128, 128, 8
    $region13: #{bp_forward.1} parent=1 // pred_fallthru
      _
    // Predicated region
    $region14: #{bp_forward.1} parent=1 // pred_check
      _
    $region15: #{bp_forward.1} parent=1 // pred_check_branch
      %33 = sbr.rel (0) target = $region17
    $region16: #{bp_forward.1} parent=1 // pred_region
      %s35 = ssub.s32 4096, 4096
      %36 = vsyncadd [#allocation5], %s35
      %s37 = sshll.u32 [#allocation4], 4
      %s38 = int_to_ptr.vmem [resolvable:$true] %s37
      %43 = dma.hbm_to_vmem [thread:$0]  %s3, 4096, %s38, [#allocation5], 128, 128, 8
    $region17: #{bp_forward.1} parent=1 // pred_fallthru
      _
    // Predicated region
    $region18: #{bp_forward.1} parent=1 // pred_check
      _
    $region19: #{bp_forward.1} parent=1 // pred_check_branch
      %45 = sbr.rel (0) target = $region21
    $region20: #{bp_forward.1} parent=1 // pred_region
      %s47 = ssub.s32 4096, 4096
      %48 = vsyncadd [#allocation5], %s47
      %s49 = sshll.u32 [#allocation6], 4
      %s50 = int_to_ptr.vmem [resolvable:$true] %s49
      %55 = dma.hbm_to_vmem [thread:$0]  %s4, 4096, %s50, [#allocation5], 128, 128, 8
    $region21: #{bp_forward.1} parent=1 // pred_fallthru
      _
    // Predicated region
    $region22: #{bp_forward.1} parent=1 // pred_check
      _
    $region23: #{bp_forward.1} parent=1 // pred_check_branch
      %57 = sbr.rel (0) target = $region25
    $region24: #{bp_forward.1} parent=1 // pred_region
      %s59 = ssub.s32 4096, 4096
      %60 = vsyncadd [#allocation8], %s59
      %s61 = sshll.u32 [#allocation7], 4
      %s62 = int_to_ptr.vmem [resolvable:$true] %s61
      %67 = dma.hbm_to_vmem [thread:$0]  %s5, 4096, %s62, [#allocation8], 128, 128, 8
    $region25: #{bp_forward.1} parent=1 // pred_fallthru
      _
    // Predicated region
    $region26: #{bp_forward.1} parent=1 // pred_check
      _
    $region27: #{bp_forward.1} parent=1 // pred_check_branch
      %69 = sbr.rel (0) target = $region29
    $region28: #{bp_forward.1} parent=1 // pred_region
      %s71 = ssub.s32 2048, 2048
      %72 = vsyncadd [#allocation8], %s71
      %s73 = sshll.u32 [#allocation9], 4
      %s74 = int_to_ptr.vmem [resolvable:$true] %s73
      %79 = dma.hbm_to_vmem [thread:$0]  %s6, 2048, %s74, [#allocation8], 64, 64, 4
    $region29: #{bp_forward.1} parent=1 // pred_fallthru
      _
    // Predicated region
    $region30: #{bp_forward.1} parent=1 // pred_check
      _
    $region31: #{bp_forward.1} parent=1 // pred_check_branch
      %81 = sbr.rel (0) target = $region33
    $region32: #{bp_forward.1} parent=1 // pred_region
      _
    $region33: #{bp_forward.1} parent=1 // pred_fallthru
      _
    // Predicated region
    $region34: #{bp_forward.1} parent=1 // pred_check
      _
    $region35: #{bp_forward.1} parent=1 // pred_check_branch
      %83 = sbr.rel (0) target = $region37
    $region36: #{bp_forward.1} parent=1 // pred_region
      %84 = dma.done [#allocation3], 4096
    $region37: #{bp_forward.1} parent=1 // pred_fallthru
      _
    // Predicated region
    $region38: #{bp_forward.1} parent=1 // pred_check
      _
    $region39: #{bp_forward.1} parent=1 // pred_check_branch
      %86 = sbr.rel (0) target = $region41
    $region40: #{bp_forward.1} parent=1 // pred_region
      %87 = dma.done [#allocation5], 4096
    $region41: #{bp_forward.1} parent=1 // pred_fallthru
      _
    // Predicated region
    $region42: #{bp_forward.1} parent=1 // pred_check
      _
    $region43: #{bp_forward.1} parent=1 // pred_check_branch
      %89 = sbr.rel (0) target = $region45
    $region44: #{bp_forward.1} parent=1 // pred_region
      %90 = dma.done [#allocation5], 4096
    $region45: #{bp_forward.1} parent=1 // pred_fallthru
      _
    // Predicated region
    $region46: #{bp_forward.1} parent=1 // pred_check
      _
    $region47: #{bp_forward.1} parent=1 // pred_check_branch
      %92 = sbr.rel (0) target = $region49
    $region48: #{bp_forward.1} parent=1 // pred_region
      %93 = dma.done [#allocation8], 4096
    $region49: #{bp_forward.1} parent=1 // pred_fallthru
      _
    // Predicated region
    $region50: #{bp_forward.1} parent=1 // pred_check
      _
    $region51: #{bp_forward.1} parent=1 // pred_check_branch
      %95 = sbr.rel (0) target = $region53
    $region52: #{bp_forward.1} parent=1 // pred_region
      %96 = dma.done [#allocation8], 2048
    $region53: #{bp_forward.1} parent=1 // pred_fallthru
      _
    %v99 = vld [vmem:[%s0] sm:$0xf]
    %v100 = vld [vmem:[%s1] sm:$0xff]
    %v101 = vld [vmem:[%s1 + $0x8] sm:$0xff]
    %v104 = vunpack.c.l.b16 %v100
    %v105 = vunpack.c.h.b16 %v100
    %v106 = vunpack.c.l.b16 %v101
    %v107 = vunpack.c.h.b16 %v101
    %v108 = vpack.c.b16 %v106, %v104
    %v109 = vpack.c.b16 %v107, %v105
    %vm112 = vcmask 130048
    %v114 = vsel %vm112, %v99, 0
    %116 = vmatprep.subr.bf16.mxu0 %v109
    %117 = vmatpush1.bf16.msra.mxu0 %v108
    %118 = vmatprep.subr.bf16.mxu0 0
    %119 = vmatpush1.bf16.msra.mxu0 0
    %120 = vmatprep.subr.bf16.mxu0 0
    %121 = vmatpush1.bf16.msra.mxu0 0
    %122 = vmatprep.subr.bf16.mxu0 0
    %123 = vmatpush1.bf16.msra.mxu0 0
    %124 = vmatprep.subr.bf16.mxu0 0
    %125 = vmatpush1.bf16.msra.mxu0 0
    %126 = vmatprep.subr.bf16.mxu0 0
    %127 = vmatpush1.bf16.msra.mxu0 0
    %128 = vmatprep.subr.bf16.mxu0 0
    %129 = vmatpush1.bf16.msra.mxu0 0
    %130 = vmatprep.subr.bf16.mxu0 0
    %131 = vmatpush1.bf16.msra.mxu0 0
    %132 = vmatprep.subr.bf16.mxu0 0
    %133 = vmatpush1.bf16.msra.mxu0 0
    %134 = vmatprep.subr.bf16.mxu0 0
    %135 = vmatpush1.bf16.msra.mxu0 0
    %136 = vmatprep.subr.bf16.mxu0 0
    %137 = vmatpush1.bf16.msra.mxu0 0
    %138 = vmatprep.subr.bf16.mxu0 0
    %139 = vmatpush1.bf16.msra.mxu0 0
    %140 = vmatprep.subr.bf16.mxu0 0
    %141 = vmatpush1.bf16.msra.mxu0 0
    %142 = vmatprep.subr.bf16.mxu0 0
    %143 = vmatpush1.bf16.msra.mxu0 0
    %144 = vmatprep.subr.bf16.mxu0 0
    %145 = vmatpush1.bf16.msra.mxu0 0
    %146 = vmatprep.subr.bf16.mxu0 0
    %147 = vmatpush1.bf16.msra.mxu0 0
    %148 = vmatprep.mubr.bf16.mxu0 0
    %149 = vmatmul.mubr.bf16.gmra.mrb[0].mxu0 %v114
    %v150 = vpop.f32.mrb[0].mxu0
    %v151 = vadd.f32 0.0, %v150
    %v152 = vpop.f32.mrb[0].mxu0
    %v153 = vadd.f32 0.0, %v152
    %v154 = vpop.f32.mrb[0].mxu0
    %v155 = vpop.f32.mrb[0].mxu0
    %156 = vdwg.mxu0
    %v157 = vld [vmem:[%s7] ss:$8 sm:$0x3]
    %v158 = vpack.c.bf16 %v151, %v151
    %v159 = vpack.c.bf16 %v153, %v153
    %v161 = vlaneseq
    %v162 = vshrl.u32 %v161, 7
    %v163 = vsub.s32 0, %v162
    %v164 = vrot.slane %v157, %v163
    %v165 = vlaneseq
    %v166 = vshrl.u32 %v165, 7
    %v167 = vsub.s32 1, %v166
    %v168 = vrot.slane %v157, %v167
    %v171 = vpack.c.bf16 %v164, %v164
    %v172 = vpack.c.bf16 %v168, %v168
    %v174 = vpack.i.b16 %v171, %v171
    %v176 = vlaneseq
    %v177 = vshrl.u32 %v176, 7
    %v178 = vsub.s32 0, %v177
    %v179 = vrot.slane %v174, %v178
    %v181 = vpack.i.b16 %v172, %v172
    %v183 = vlaneseq
    %v184 = vshrl.u32 %v183, 7
    %v185 = vsub.s32 0, %v184
    %v186 = vrot.slane %v181, %v185
    %v187 = vadd.bf16 %v158, %v179
    %v188 = vadd.bf16 %v159, %v186
    %v189 = vmul.bf16 %v187, 1009007652
    %v190 = vmul.bf16 %v188, 1009007652
    %v191 = vmax.bf16 %v187, %v189
    %v192 = vmax.bf16 %v188, %v190
    %v193 = vld [vmem:[#allocation2] sm:$0xff]
    %v194 = vld [vmem:[#allocation2 + $0x8] sm:$0xff]
    %v195 = vld [vmem:[#allocation2 + $0x10] sm:$0xff]
    %v196 = vld [vmem:[#allocation2 + $0x18] sm:$0xff]
    %v197 = vld [vmem:[#allocation2 + $0x20] sm:$0xff]
    %v198 = vld [vmem:[#allocation2 + $0x28] sm:$0xff]
    %v199 = vld [vmem:[#allocation2 + $0x30] sm:$0xff]
    %v200 = vld [vmem:[#allocation2 + $0x38] sm:$0xff]
    %v201 = vld [vmem:[#allocation2 + $0x40] sm:$0xff]
    %v202 = vld [vmem:[#allocation2 + $0x48] sm:$0xff]
    %v203 = vld [vmem:[#allocation2 + $0x50] sm:$0xff]
    %v204 = vld [vmem:[#allocation2 + $0x58] sm:$0xff]
    %v205 = vld [vmem:[#allocation2 + $0x60] sm:$0xff]
    %v206 = vld [vmem:[#allocation2 + $0x68] sm:$0xff]
    %v207 = vld [vmem:[#allocation2 + $0x70] sm:$0xff]
    %v208 = vld [vmem:[#allocation2 + $0x78] sm:$0xff]
    %v209 = vld [vmem:[#allocation2 + $0x80] sm:$0xff]
    %v210 = vld [vmem:[#allocation2 + $0x88] sm:$0xff]
    %v211 = vld [vmem:[#allocation2 + $0x90] sm:$0xff]
    %v212 = vld [vmem:[#allocation2 + $0x98] sm:$0xff]
    %v213 = vld [vmem:[#allocation2 + $0xa0] sm:$0xff]
    %v214 = vld [vmem:[#allocation2 + $0xa8] sm:$0xff]
    %v215 = vld [vmem:[#allocation2 + $0xb0] sm:$0xff]
    %v216 = vld [vmem:[#allocation2 + $0xb8] sm:$0xff]
    %v217 = vld [vmem:[#allocation2 + $0xc0] sm:$0xff]
    %v218 = vld [vmem:[#allocation2 + $0xc8] sm:$0xff]
    %v219 = vld [vmem:[#allocation2 + $0xd0] sm:$0xff]
    %v220 = vld [vmem:[#allocation2 + $0xd8] sm:$0xff]
    %v221 = vld [vmem:[#allocation2 + $0xe0] sm:$0xff]
    %v222 = vld [vmem:[#allocation2 + $0xe8] sm:$0xff]
    %v223 = vld [vmem:[#allocation2 + $0xf0] sm:$0xff]
    %v224 = vld [vmem:[#allocation2 + $0xf8] sm:$0xff]
    %v257 = vunpack.c.l.b16 %v193
    %v258 = vunpack.c.h.b16 %v193
    %v259 = vunpack.c.l.b16 %v194
    %v260 = vunpack.c.h.b16 %v194
    %v261 = vunpack.c.l.b16 %v195
    %v262 = vunpack.c.h.b16 %v195
    %v263 = vunpack.c.l.b16 %v196
    %v264 = vunpack.c.h.b16 %v196
    %v265 = vunpack.c.l.b16 %v197
    %v266 = vunpack.c.h.b16 %v197
    %v267 = vunpack.c.l.b16 %v198
    %v268 = vunpack.c.h.b16 %v198
    %v269 = vunpack.c.l.b16 %v199
    %v270 = vunpack.c.h.b16 %v199
    %v271 = vunpack.c.l.b16 %v200
    %v272 = vunpack.c.h.b16 %v200
    %v273 = vunpack.c.l.b16 %v201
    %v274 = vunpack.c.h.b16 %v201
    %v275 = vunpack.c.l.b16 %v202
    %v276 = vunpack.c.h.b16 %v202
    %v277 = vunpack.c.l.b16 %v203
    %v278 = vunpack.c.h.b16 %v203
    %v279 = vunpack.c.l.b16 %v204
    %v280 = vunpack.c.h.b16 %v204
    %v281 = vunpack.c.l.b16 %v205
    %v282 = vunpack.c.h.b16 %v205
    %v283 = vunpack.c.l.b16 %v206
    %v284 = vunpack.c.h.b16 %v206
    %v285 = vunpack.c.l.b16 %v207
    %v286 = vunpack.c.h.b16 %v207
    %v287 = vunpack.c.l.b16 %v208
    %v288 = vunpack.c.h.b16 %v208
    %v289 = vunpack.c.l.b16 %v209
    %v290 = vunpack.c.h.b16 %v209
    %v291 = vunpack.c.l.b16 %v210
    %v292 = vunpack.c.h.b16 %v210
    %v293 = vunpack.c.l.b16 %v211
    %v294 = vunpack.c.h.b16 %v211
    %v295 = vunpack.c.l.b16 %v212
    %v296 = vunpack.c.h.b16 %v212
    %v297 = vunpack.c.l.b16 %v213
    %v298 = vunpack.c.h.b16 %v213
    %v299 = vunpack.c.l.b16 %v214
    %v300 = vunpack.c.h.b16 %v214
    %v301 = vunpack.c.l.b16 %v215
    %v302 = vunpack.c.h.b16 %v215
    %v303 = vunpack.c.l.b16 %v216
    %v304 = vunpack.c.h.b16 %v216
    %v305 = vunpack.c.l.b16 %v217
    %v306 = vunpack.c.h.b16 %v217
    %v307 = vunpack.c.l.b16 %v218
    %v308 = vunpack.c.h.b16 %v218
    %v309 = vunpack.c.l.b16 %v219
    %v310 = vunpack.c.h.b16 %v219
    %v311 = vunpack.c.l.b16 %v220
    %v312 = vunpack.c.h.b16 %v220
    %v313 = vunpack.c.l.b16 %v221
    %v314 = vunpack.c.h.b16 %v221
    %v315 = vunpack.c.l.b16 %v222
    %v316 = vunpack.c.h.b16 %v222
    %v317 = vunpack.c.l.b16 %v223
    %v318 = vunpack.c.h.b16 %v223
    %v319 = vunpack.c.l.b16 %v224
    %v320 = vunpack.c.h.b16 %v224
    %v321 = vpack.c.b16 %v259, %v257
    %v322 = vpack.c.b16 %v260, %v258
    %v323 = vpack.c.b16 %v263, %v261
    %v324 = vpack.c.b16 %v264, %v262
    %v325 = vpack.c.b16 %v267, %v265
    %v326 = vpack.c.b16 %v268, %v266
    %v327 = vpack.c.b16 %v271, %v269
    %v328 = vpack.c.b16 %v272, %v270
    %v329 = vpack.c.b16 %v275, %v273
    %v330 = vpack.c.b16 %v276, %v274
    %v331 = vpack.c.b16 %v279, %v277
    %v332 = vpack.c.b16 %v280, %v278
    %v333 = vpack.c.b16 %v283, %v281
    %v334 = vpack.c.b16 %v284, %v282
    %v335 = vpack.c.b16 %v287, %v285
    %v336 = vpack.c.b16 %v288, %v286
    %v337 = vpack.c.b16 %v291, %v289
    %v338 = vpack.c.b16 %v292, %v290
    %v339 = vpack.c.b16 %v295, %v293
    %v340 = vpack.c.b16 %v296, %v294
    %v341 = vpack.c.b16 %v299, %v297
    %v342 = vpack.c.b16 %v300, %v298
    %v343 = vpack.c.b16 %v303, %v301
    %v344 = vpack.c.b16 %v304, %v302
    %v345 = vpack.c.b16 %v307, %v305
    %v346 = vpack.c.b16 %v308, %v306
    %v347 = vpack.c.b16 %v311, %v309
    %v348 = vpack.c.b16 %v312, %v310
    %v349 = vpack.c.b16 %v315, %v313
    %v350 = vpack.c.b16 %v316, %v314
    %v351 = vpack.c.b16 %v319, %v317
    %v352 = vpack.c.b16 %v320, %v318
    %385 = vmatprep.subr.bf16.mxu0 %v322
    %386 = vmatpush1.bf16.msra.mxu0 %v321
    %387 = vmatprep.subr.bf16.mxu0 %v324
    %388 = vmatpush1.bf16.msra.mxu0 %v323
    %389 = vmatprep.subr.bf16.mxu0 %v326
    %390 = vmatpush1.bf16.msra.mxu0 %v325
    %391 = vmatprep.subr.bf16.mxu0 %v328
    %392 = vmatpush1.bf16.msra.mxu0 %v327
    %393 = vmatprep.subr.bf16.mxu0 %v330
    %394 = vmatpush1.bf16.msra.mxu0 %v329
    %395 = vmatprep.subr.bf16.mxu0 %v332
    %396 = vmatpush1.bf16.msra.mxu0 %v331
    %397 = vmatprep.subr.bf16.mxu0 %v334
    %398 = vmatpush1.bf16.msra.mxu0 %v333
    %399 = vmatprep.subr.bf16.mxu0 %v336
    %400 = vmatpush1.bf16.msra.mxu0 %v335
    %401 = vmatprep.subr.bf16.mxu0 %v338
    %402 = vmatpush1.bf16.msra.mxu0 %v337
    %403 = vmatprep.subr.bf16.mxu0 %v340
    %404 = vmatpush1.bf16.msra.mxu0 %v339
    %405 = vmatprep.subr.bf16.mxu0 %v342
    %406 = vmatpush1.bf16.msra.mxu0 %v341
    %407 = vmatprep.subr.bf16.mxu0 %v344
    %408 = vmatpush1.bf16.msra.mxu0 %v343
    %409 = vmatprep.subr.bf16.mxu0 %v346
    %410 = vmatpush1.bf16.msra.mxu0 %v345
    %411 = vmatprep.subr.bf16.mxu0 %v348
    %412 = vmatpush1.bf16.msra.mxu0 %v347
    %413 = vmatprep.subr.bf16.mxu0 %v350
    %414 = vmatpush1.bf16.msra.mxu0 %v349
    %415 = vmatprep.subr.bf16.mxu0 %v352
    %416 = vmatpush1.bf16.msra.mxu0 %v351
    %417 = vmatprep.mubr.bf16.mxu0 %v192
    %418 = vmatmul.mubr.bf16.gmra.mrb[0].mxu0 %v191
    %v419 = vpop.f32.mrb[0].mxu0
    %v420 = vadd.f32 0.0, %v419
    %v421 = vpop.f32.mrb[0].mxu0
    %v422 = vadd.f32 0.0, %v421
    %v423 = vpop.f32.mrb[0].mxu0
    %v424 = vpop.f32.mrb[0].mxu0
    %425 = vdwg.mxu0
    %s426 = scalar_lea.vmem %s7, 1
    %v427 = vld [vmem:[%s426] ss:$8 sm:$0x3]
    %v428 = vpack.c.bf16 %v420, %v420
    %v429 = vpack.c.bf16 %v422, %v422
    %v431 = vlaneseq
    %v432 = vshrl.u32 %v431, 7
    %v433 = vsub.s32 0, %v432
    %v434 = vrot.slane %v427, %v433
    %v435 = vlaneseq
    %v436 = vshrl.u32 %v435, 7
    %v437 = vsub.s32 1, %v436
    %v438 = vrot.slane %v427, %v437
    %v441 = vpack.c.bf16 %v434, %v434
    %v442 = vpack.c.bf16 %v438, %v438
    %v444 = vpack.i.b16 %v441, %v441
    %v446 = vlaneseq
    %v447 = vshrl.u32 %v446, 7
    %v448 = vsub.s32 0, %v447
    %v449 = vrot.slane %v444, %v448
    %v451 = vpack.i.b16 %v442, %v442
    %v453 = vlaneseq
    %v454 = vshrl.u32 %v453, 7
    %v455 = vsub.s32 0, %v454
    %v456 = vrot.slane %v451, %v455
    %v457 = vadd.bf16 %v428, %v449
    %v458 = vadd.bf16 %v429, %v456
    %v459 = vmul.bf16 %v457, 1009007652
    %v460 = vmul.bf16 %v458, 1009007652
    %v461 = vmax.bf16 %v457, %v459
    %v462 = vmax.bf16 %v458, %v460
    %v463 = vld [vmem:[#allocation4] sm:$0xff]
    %v464 = vld [vmem:[#allocation4 + $0x8] sm:$0xff]
    %v465 = vld [vmem:[#allocation4 + $0x10] sm:$0xff]
    %v466 = vld [vmem:[#allocation4 + $0x18] sm:$0xff]
    %v467 = vld [vmem:[#allocation4 + $0x20] sm:$0xff]
    %v468 = vld [vmem:[#allocation4 + $0x28] sm:$0xff]
    %v469 = vld [vmem:[#allocation4 + $0x30] sm:$0xff]
    %v470 = vld [vmem:[#allocation4 + $0x38] sm:$0xff]
    %v471 = vld [vmem:[#allocation4 + $0x40] sm:$0xff]
    %v472 = vld [vmem:[#allocation4 + $0x48] sm:$0xff]
    %v473 = vld [vmem:[#allocation4 + $0x50] sm:$0xff]
    %v474 = vld [vmem:[#allocation4 + $0x58] sm:$0xff]
    %v475 = vld [vmem:[#allocation4 + $0x60] sm:$0xff]
    %v476 = vld [vmem:[#allocation4 + $0x68] sm:$0xff]
    %v477 = vld [vmem:[#allocation4 + $0x70] sm:$0xff]
    %v478 = vld [vmem:[#allocation4 + $0x78] sm:$0xff]
    %v479 = vld [vmem:[#allocation4 + $0x80] sm:$0xff]
    %v480 = vld [vmem:[#allocation4 + $0x88] sm:$0xff]
    %v481 = vld [vmem:[#allocation4 + $0x90] sm:$0xff]
    %v482 = vld [vmem:[#allocation4 + $0x98] sm:$0xff]
    %v483 = vld [vmem:[#allocation4 + $0xa0] sm:$0xff]
    %v484 = vld [vmem:[#allocation4 + $0xa8] sm:$0xff]
    %v485 = vld [vmem:[#allocation4 + $0xb0] sm:$0xff]
    %v486 = vld [vmem:[#allocation4 + $0xb8] sm:$0xff]
    %v487 = vld [vmem:[#allocation4 + $0xc0] sm:$0xff]
    %v488 = vld [vmem:[#allocation4 + $0xc8] sm:$0xff]
    %v489 = vld [vmem:[#allocation4 + $0xd0] sm:$0xff]
    %v490 = vld [vmem:[#allocation4 + $0xd8] sm:$0xff]
    %v491 = vld [vmem:[#allocation4 + $0xe0] sm:$0xff]
    %v492 = vld [vmem:[#allocation4 + $0xe8] sm:$0xff]
    %v493 = vld [vmem:[#allocation4 + $0xf0] sm:$0xff]
    %v494 = vld [vmem:[#allocation4 + $0xf8] sm:$0xff]
    %v527 = vunpack.c.l.b16 %v463
    %v528 = vunpack.c.h.b16 %v463
    %v529 = vunpack.c.l.b16 %v464
    %v530 = vunpack.c.h.b16 %v464
    %v531 = vunpack.c.l.b16 %v465
    %v532 = vunpack.c.h.b16 %v465
    %v533 = vunpack.c.l.b16 %v466
    %v534 = vunpack.c.h.b16 %v466
    %v535 = vunpack.c.l.b16 %v467
    %v536 = vunpack.c.h.b16 %v467
    %v537 = vunpack.c.l.b16 %v468
    %v538 = vunpack.c.h.b16 %v468
    %v539 = vunpack.c.l.b16 %v469
    %v540 = vunpack.c.h.b16 %v469
    %v541 = vunpack.c.l.b16 %v470
    %v542 = vunpack.c.h.b16 %v470
    %v543 = vunpack.c.l.b16 %v471
    %v544 = vunpack.c.h.b16 %v471
    %v545 = vunpack.c.l.b16 %v472
    %v546 = vunpack.c.h.b16 %v472
    %v547 = vunpack.c.l.b16 %v473
    %v548 = vunpack.c.h.b16 %v473
    %v549 = vunpack.c.l.b16 %v474
    %v550 = vunpack.c.h.b16 %v474
    %v551 = vunpack.c.l.b16 %v475
    %v552 = vunpack.c.h.b16 %v475
    %v553 = vunpack.c.l.b16 %v476
    %v554 = vunpack.c.h.b16 %v476
    %v555 = vunpack.c.l.b16 %v477
    %v556 = vunpack.c.h.b16 %v477
    %v557 = vunpack.c.l.b16 %v478
    %v558 = vunpack.c.h.b16 %v478
    %v559 = vunpack.c.l.b16 %v479
    %v560 = vunpack.c.h.b16 %v479
    %v561 = vunpack.c.l.b16 %v480
    %v562 = vunpack.c.h.b16 %v480
    %v563 = vunpack.c.l.b16 %v481
    %v564 = vunpack.c.h.b16 %v481
    %v565 = vunpack.c.l.b16 %v482
    %v566 = vunpack.c.h.b16 %v482
    %v567 = vunpack.c.l.b16 %v483
    %v568 = vunpack.c.h.b16 %v483
    %v569 = vunpack.c.l.b16 %v484
    %v570 = vunpack.c.h.b16 %v484
    %v571 = vunpack.c.l.b16 %v485
    %v572 = vunpack.c.h.b16 %v485
    %v573 = vunpack.c.l.b16 %v486
    %v574 = vunpack.c.h.b16 %v486
    %v575 = vunpack.c.l.b16 %v487
    %v576 = vunpack.c.h.b16 %v487
    %v577 = vunpack.c.l.b16 %v488
    %v578 = vunpack.c.h.b16 %v488
    %v579 = vunpack.c.l.b16 %v489
    %v580 = vunpack.c.h.b16 %v489
    %v581 = vunpack.c.l.b16 %v490
    %v582 = vunpack.c.h.b16 %v490
    %v583 = vunpack.c.l.b16 %v491
    %v584 = vunpack.c.h.b16 %v491
    %v585 = vunpack.c.l.b16 %v492
    %v586 = vunpack.c.h.b16 %v492
    %v587 = vunpack.c.l.b16 %v493
    %v588 = vunpack.c.h.b16 %v493
    %v589 = vunpack.c.l.b16 %v494
    %v590 = vunpack.c.h.b16 %v494
    %v591 = vpack.c.b16 %v529, %v527
    %v592 = vpack.c.b16 %v530, %v528
    %v593 = vpack.c.b16 %v533, %v531
    %v594 = vpack.c.b16 %v534, %v532
    %v595 = vpack.c.b16 %v537, %v535
    %v596 = vpack.c.b16 %v538, %v536
    %v597 = vpack.c.b16 %v541, %v539
    %v598 = vpack.c.b16 %v542, %v540
    %v599 = vpack.c.b16 %v545, %v543
    %v600 = vpack.c.b16 %v546, %v544
    %v601 = vpack.c.b16 %v549, %v547
    %v602 = vpack.c.b16 %v550, %v548
    %v603 = vpack.c.b16 %v553, %v551
    %v604 = vpack.c.b16 %v554, %v552
    %v605 = vpack.c.b16 %v557, %v555
    %v606 = vpack.c.b16 %v558, %v556
    %v607 = vpack.c.b16 %v561, %v559
    %v608 = vpack.c.b16 %v562, %v560
    %v609 = vpack.c.b16 %v565, %v563
    %v610 = vpack.c.b16 %v566, %v564
    %v611 = vpack.c.b16 %v569, %v567
    %v612 = vpack.c.b16 %v570, %v568
    %v613 = vpack.c.b16 %v573, %v571
    %v614 = vpack.c.b16 %v574, %v572
    %v615 = vpack.c.b16 %v577, %v575
    %v616 = vpack.c.b16 %v578, %v576
    %v617 = vpack.c.b16 %v581, %v579
    %v618 = vpack.c.b16 %v582, %v580
    %v619 = vpack.c.b16 %v585, %v583
    %v620 = vpack.c.b16 %v586, %v584
    %v621 = vpack.c.b16 %v589, %v587
    %v622 = vpack.c.b16 %v590, %v588
    %655 = vmatprep.subr.bf16.mxu0 %v592
    %656 = vmatpush1.bf16.msra.mxu0 %v591
    %657 = vmatprep.subr.bf16.mxu0 %v594
    %658 = vmatpush1.bf16.msra.mxu0 %v593
    %659 = vmatprep.subr.bf16.mxu0 %v596
    %660 = vmatpush1.bf16.msra.mxu0 %v595
    %661 = vmatprep.subr.bf16.mxu0 %v598
    %662 = vmatpush1.bf16.msra.mxu0 %v597
    %663 = vmatprep.subr.bf16.mxu0 %v600
    %664 = vmatpush1.bf16.msra.mxu0 %v599
    %665 = vmatprep.subr.bf16.mxu0 %v602
    %666 = vmatpush1.bf16.msra.mxu0 %v601
    %667 = vmatprep.subr.bf16.mxu0 %v604
    %668 = vmatpush1.bf16.msra.mxu0 %v603
    %669 = vmatprep.subr.bf16.mxu0 %v606
    %670 = vmatpush1.bf16.msra.mxu0 %v605
    %671 = vmatprep.subr.bf16.mxu0 %v608
    %672 = vmatpush1.bf16.msra.mxu0 %v607
    %673 = vmatprep.subr.bf16.mxu0 %v610
    %674 = vmatpush1.bf16.msra.mxu0 %v609
    %675 = vmatprep.subr.bf16.mxu0 %v612
    %676 = vmatpush1.bf16.msra.mxu0 %v611
    %677 = vmatprep.subr.bf16.mxu0 %v614
    %678 = vmatpush1.bf16.msra.mxu0 %v613
    %679 = vmatprep.subr.bf16.mxu0 %v616
    %680 = vmatpush1.bf16.msra.mxu0 %v615
    %681 = vmatprep.subr.bf16.mxu0 %v618
    %682 = vmatpush1.bf16.msra.mxu0 %v617
    %683 = vmatprep.subr.bf16.mxu0 %v620
    %684 = vmatpush1.bf16.msra.mxu0 %v619
    %685 = vmatprep.subr.bf16.mxu0 %v622
    %686 = vmatpush1.bf16.msra.mxu0 %v621
    %687 = vmatprep.mubr.bf16.mxu0 %v462
    %688 = vmatmul.mubr.bf16.gmra.mrb[0].mxu0 %v461
    %v689 = vpop.f32.mrb[0].mxu0
    %v690 = vadd.f32 0.0, %v689
    %v691 = vpop.f32.mrb[0].mxu0
    %v692 = vadd.f32 0.0, %v691
    %v693 = vpop.f32.mrb[0].mxu0
    %v694 = vpop.f32.mrb[0].mxu0
    %695 = vdwg.mxu0
    %s696 = scalar_lea.vmem %s7, 2
    %v697 = vld [vmem:[%s696] ss:$8 sm:$0x3]
    %v698 = vpack.c.bf16 %v690, %v690
    %v699 = vpack.c.bf16 %v692, %v692
    %v701 = vlaneseq
    %v702 = vshrl.u32 %v701, 7
    %v703 = vsub.s32 0, %v702
    %v704 = vrot.slane %v697, %v703
    %v705 = vlaneseq
    %v706 = vshrl.u32 %v705, 7
    %v707 = vsub.s32 1, %v706
    %v708 = vrot.slane %v697, %v707
    %v711 = vpack.c.bf16 %v704, %v704
    %v712 = vpack.c.bf16 %v708, %v708
    %v714 = vpack.i.b16 %v711, %v711
    %v716 = vlaneseq
    %v717 = vshrl.u32 %v716, 7
    %v718 = vsub.s32 0, %v717
    %v719 = vrot.slane %v714, %v718
    %v721 = vpack.i.b16 %v712, %v712
    %v723 = vlaneseq
    %v724 = vshrl.u32 %v723, 7
    %v725 = vsub.s32 0, %v724
    %v726 = vrot.slane %v721, %v725
    %v727 = vadd.bf16 %v698, %v719
    %v728 = vadd.bf16 %v699, %v726
    %v729 = vmul.bf16 %v727, 1009007652
    %v730 = vmul.bf16 %v728, 1009007652
    %v731 = vmax.bf16 %v727, %v729
    %v732 = vmax.bf16 %v728, %v730
    %v733 = vld [vmem:[#allocation6] sm:$0xff]
    %v734 = vld [vmem:[#allocation6 + $0x8] sm:$0xff]
    %v735 = vld [vmem:[#allocation6 + $0x10] sm:$0xff]
    %v736 = vld [vmem:[#allocation6 + $0x18] sm:$0xff]
    %v737 = vld [vmem:[#allocation6 + $0x20] sm:$0xff]
    %v738 = vld [vmem:[#allocation6 + $0x28] sm:$0xff]
    %v739 = vld [vmem:[#allocation6 + $0x30] sm:$0xff]
    %v740 = vld [vmem:[#allocation6 + $0x38] sm:$0xff]
    %v741 = vld [vmem:[#allocation6 + $0x40] sm:$0xff]
    %v742 = vld [vmem:[#allocation6 + $0x48] sm:$0xff]
    %v743 = vld [vmem:[#allocation6 + $0x50] sm:$0xff]
    %v744 = vld [vmem:[#allocation6 + $0x58] sm:$0xff]
    %v745 = vld [vmem:[#allocation6 + $0x60] sm:$0xff]
    %v746 = vld [vmem:[#allocation6 + $0x68] sm:$0xff]
    %v747 = vld [vmem:[#allocation6 + $0x70] sm:$0xff]
    %v748 = vld [vmem:[#allocation6 + $0x78] sm:$0xff]
    %v749 = vld [vmem:[#allocation6 + $0x80] sm:$0xff]
    %v750 = vld [vmem:[#allocation6 + $0x88] sm:$0xff]
    %v751 = vld [vmem:[#allocation6 + $0x90] sm:$0xff]
    %v752 = vld [vmem:[#allocation6 + $0x98] sm:$0xff]
    %v753 = vld [vmem:[#allocation6 + $0xa0] sm:$0xff]
    %v754 = vld [vmem:[#allocation6 + $0xa8] sm:$0xff]
    %v755 = vld [vmem:[#allocation6 + $0xb0] sm:$0xff]
    %v756 = vld [vmem:[#allocation6 + $0xb8] sm:$0xff]
    %v757 = vld [vmem:[#allocation6 + $0xc0] sm:$0xff]
    %v758 = vld [vmem:[#allocation6 + $0xc8] sm:$0xff]
    %v759 = vld [vmem:[#allocation6 + $0xd0] sm:$0xff]
    %v760 = vld [vmem:[#allocation6 + $0xd8] sm:$0xff]
    %v761 = vld [vmem:[#allocation6 + $0xe0] sm:$0xff]
    %v762 = vld [vmem:[#allocation6 + $0xe8] sm:$0xff]
    %v763 = vld [vmem:[#allocation6 + $0xf0] sm:$0xff]
    %v764 = vld [vmem:[#allocation6 + $0xf8] sm:$0xff]
    %v797 = vunpack.c.l.b16 %v733
    %v798 = vunpack.c.h.b16 %v733
    %v799 = vunpack.c.l.b16 %v734
    %v800 = vunpack.c.h.b16 %v734
    %v801 = vunpack.c.l.b16 %v735
    %v802 = vunpack.c.h.b16 %v735
    %v803 = vunpack.c.l.b16 %v736
    %v804 = vunpack.c.h.b16 %v736
    %v805 = vunpack.c.l.b16 %v737
    %v806 = vunpack.c.h.b16 %v737
    %v807 = vunpack.c.l.b16 %v738
    %v808 = vunpack.c.h.b16 %v738
    %v809 = vunpack.c.l.b16 %v739
    %v810 = vunpack.c.h.b16 %v739
    %v811 = vunpack.c.l.b16 %v740
    %v812 = vunpack.c.h.b16 %v740
    %v813 = vunpack.c.l.b16 %v741
    %v814 = vunpack.c.h.b16 %v741
    %v815 = vunpack.c.l.b16 %v742
    %v816 = vunpack.c.h.b16 %v742
    %v817 = vunpack.c.l.b16 %v743
    %v818 = vunpack.c.h.b16 %v743
    %v819 = vunpack.c.l.b16 %v744
    %v820 = vunpack.c.h.b16 %v744
    %v821 = vunpack.c.l.b16 %v745
    %v822 = vunpack.c.h.b16 %v745
    %v823 = vunpack.c.l.b16 %v746
    %v824 = vunpack.c.h.b16 %v746
    %v825 = vunpack.c.l.b16 %v747
    %v826 = vunpack.c.h.b16 %v747
    %v827 = vunpack.c.l.b16 %v748
    %v828 = vunpack.c.h.b16 %v748
    %v829 = vunpack.c.l.b16 %v749
    %v830 = vunpack.c.h.b16 %v749
    %v831 = vunpack.c.l.b16 %v750
    %v832 = vunpack.c.h.b16 %v750
    %v833 = vunpack.c.l.b16 %v751
    %v834 = vunpack.c.h.b16 %v751
    %v835 = vunpack.c.l.b16 %v752
    %v836 = vunpack.c.h.b16 %v752
    %v837 = vunpack.c.l.b16 %v753
    %v838 = vunpack.c.h.b16 %v753
    %v839 = vunpack.c.l.b16 %v754
    %v840 = vunpack.c.h.b16 %v754
    %v841 = vunpack.c.l.b16 %v755
    %v842 = vunpack.c.h.b16 %v755
    %v843 = vunpack.c.l.b16 %v756
    %v844 = vunpack.c.h.b16 %v756
    %v845 = vunpack.c.l.b16 %v757
    %v846 = vunpack.c.h.b16 %v757
    %v847 = vunpack.c.l.b16 %v758
    %v848 = vunpack.c.h.b16 %v758
    %v849 = vunpack.c.l.b16 %v759
    %v850 = vunpack.c.h.b16 %v759
    %v851 = vunpack.c.l.b16 %v760
    %v852 = vunpack.c.h.b16 %v760
    %v853 = vunpack.c.l.b16 %v761
    %v854 = vunpack.c.h.b16 %v761
    %v855 = vunpack.c.l.b16 %v762
    %v856 = vunpack.c.h.b16 %v762
    %v857 = vunpack.c.l.b16 %v763
    %v858 = vunpack.c.h.b16 %v763
    %v859 = vunpack.c.l.b16 %v764
    %v860 = vunpack.c.h.b16 %v764
    %v861 = vpack.c.b16 %v799, %v797
    %v862 = vpack.c.b16 %v800, %v798
    %v863 = vpack.c.b16 %v803, %v801
    %v864 = vpack.c.b16 %v804, %v802
    %v865 = vpack.c.b16 %v807, %v805
    %v866 = vpack.c.b16 %v808, %v806
    %v867 = vpack.c.b16 %v811, %v809
    %v868 = vpack.c.b16 %v812, %v810
    %v869 = vpack.c.b16 %v815, %v813
    %v870 = vpack.c.b16 %v816, %v814
    %v871 = vpack.c.b16 %v819, %v817
    %v872 = vpack.c.b16 %v820, %v818
    %v873 = vpack.c.b16 %v823, %v821
    %v874 = vpack.c.b16 %v824, %v822
    %v875 = vpack.c.b16 %v827, %v825
    %v876 = vpack.c.b16 %v828, %v826
    %v877 = vpack.c.b16 %v831, %v829
    %v878 = vpack.c.b16 %v832, %v830
    %v879 = vpack.c.b16 %v835, %v833
    %v880 = vpack.c.b16 %v836, %v834
    %v881 = vpack.c.b16 %v839, %v837
    %v882 = vpack.c.b16 %v840, %v838
    %v883 = vpack.c.b16 %v843, %v841
    %v884 = vpack.c.b16 %v844, %v842
    %v885 = vpack.c.b16 %v847, %v845
    %v886 = vpack.c.b16 %v848, %v846
    %v887 = vpack.c.b16 %v851, %v849
    %v888 = vpack.c.b16 %v852, %v850
    %v889 = vpack.c.b16 %v855, %v853
    %v890 = vpack.c.b16 %v856, %v854
    %v891 = vpack.c.b16 %v859, %v857
    %v892 = vpack.c.b16 %v860, %v858
    %925 = vmatprep.subr.bf16.mxu0 %v862
    %926 = vmatpush1.bf16.msra.mxu0 %v861
    %927 = vmatprep.subr.bf16.mxu0 %v864
    %928 = vmatpush1.bf16.msra.mxu0 %v863
    %929 = vmatprep.subr.bf16.mxu0 %v866
    %930 = vmatpush1.bf16.msra.mxu0 %v865
    %931 = vmatprep.subr.bf16.mxu0 %v868
    %932 = vmatpush1.bf16.msra.mxu0 %v867
    %933 = vmatprep.subr.bf16.mxu0 %v870
    %934 = vmatpush1.bf16.msra.mxu0 %v869
    %935 = vmatprep.subr.bf16.mxu0 %v872
    %936 = vmatpush1.bf16.msra.mxu0 %v871
    %937 = vmatprep.subr.bf16.mxu0 %v874
    %938 = vmatpush1.bf16.msra.mxu0 %v873
    %939 = vmatprep.subr.bf16.mxu0 %v876
    %940 = vmatpush1.bf16.msra.mxu0 %v875
    %941 = vmatprep.subr.bf16.mxu0 %v878
    %942 = vmatpush1.bf16.msra.mxu0 %v877
    %943 = vmatprep.subr.bf16.mxu0 %v880
    %944 = vmatpush1.bf16.msra.mxu0 %v879
    %945 = vmatprep.subr.bf16.mxu0 %v882
    %946 = vmatpush1.bf16.msra.mxu0 %v881
    %947 = vmatprep.subr.bf16.mxu0 %v884
    %948 = vmatpush1.bf16.msra.mxu0 %v883
    %949 = vmatprep.subr.bf16.mxu0 %v886
    %950 = vmatpush1.bf16.msra.mxu0 %v885
    %951 = vmatprep.subr.bf16.mxu0 %v888
    %952 = vmatpush1.bf16.msra.mxu0 %v887
    %953 = vmatprep.subr.bf16.mxu0 %v890
    %954 = vmatpush1.bf16.msra.mxu0 %v889
    %955 = vmatprep.subr.bf16.mxu0 %v892
    %956 = vmatpush1.bf16.msra.mxu0 %v891
    %957 = vmatprep.mubr.bf16.mxu0 %v732
    %958 = vmatmul.mubr.bf16.gmra.mrb[0].mxu0 %v731
    %v959 = vpop.f32.mrb[0].mxu0
    %v960 = vadd.f32 0.0, %v959
    %v961 = vpop.f32.mrb[0].mxu0
    %v962 = vadd.f32 0.0, %v961
    %v963 = vpop.f32.mrb[0].mxu0
    %v964 = vpop.f32.mrb[0].mxu0
    %965 = vdwg.mxu0
    %s966 = scalar_lea.vmem %s7, 3
    %v967 = vld [vmem:[%s966] ss:$8 sm:$0x3]
    %v968 = vpack.c.bf16 %v960, %v960
    %v969 = vpack.c.bf16 %v962, %v962
    %v971 = vlaneseq
    %v972 = vshrl.u32 %v971, 7
    %v973 = vsub.s32 0, %v972
    %v974 = vrot.slane %v967, %v973
    %v975 = vlaneseq
    %v976 = vshrl.u32 %v975, 7
    %v977 = vsub.s32 1, %v976
    %v978 = vrot.slane %v967, %v977
    %v981 = vpack.c.bf16 %v974, %v974
    %v982 = vpack.c.bf16 %v978, %v978
    %v984 = vpack.i.b16 %v981, %v981
    %v986 = vlaneseq
    %v987 = vshrl.u32 %v986, 7
    %v988 = vsub.s32 0, %v987
    %v989 = vrot.slane %v984, %v988
    %v991 = vpack.i.b16 %v982, %v982
    %v993 = vlaneseq
    %v994 = vshrl.u32 %v993, 7
    %v995 = vsub.s32 0, %v994
    %v996 = vrot.slane %v991, %v995
    %v997 = vadd.bf16 %v968, %v989
    %v998 = vadd.bf16 %v969, %v996
    %v999 = vmul.bf16 %v997, 1009007652
    %v1000 = vmul.bf16 %v998, 1009007652
    %v1001 = vmax.bf16 %v997, %v999
    %v1002 = vmax.bf16 %v998, %v1000
    %v1003 = vld [vmem:[#allocation7] sm:$0xff]
    %v1004 = vld [vmem:[#allocation7 + $0x8] sm:$0xff]
    %v1005 = vld [vmem:[#allocation7 + $0x10] sm:$0xff]
    %v1006 = vld [vmem:[#allocation7 + $0x18] sm:$0xff]
    %v1007 = vld [vmem:[#allocation7 + $0x20] sm:$0xff]
    %v1008 = vld [vmem:[#allocation7 + $0x28] sm:$0xff]
    %v1009 = vld [vmem:[#allocation7 + $0x30] sm:$0xff]
    %v1010 = vld [vmem:[#allocation7 + $0x38] sm:$0xff]
    %v1011 = vld [vmem:[#allocation7 + $0x40] sm:$0xff]
    %v1012 = vld [vmem:[#allocation7 + $0x48] sm:$0xff]
    %v1013 = vld [vmem:[#allocation7 + $0x50] sm:$0xff]
    %v1014 = vld [vmem:[#allocation7 + $0x58] sm:$0xff]
    %v1015 = vld [vmem:[#allocation7 + $0x60] sm:$0xff]
    %v1016 = vld [vmem:[#allocation7 + $0x68] sm:$0xff]
    %v1017 = vld [vmem:[#allocation7 + $0x70] sm:$0xff]
    %v1018 = vld [vmem:[#allocation7 + $0x78] sm:$0xff]
    %v1019 = vld [vmem:[#allocation7 + $0x80] sm:$0xff]
    %v1020 = vld [vmem:[#allocation7 + $0x88] sm:$0xff]
    %v1021 = vld [vmem:[#allocation7 + $0x90] sm:$0xff]
    %v1022 = vld [vmem:[#allocation7 + $0x98] sm:$0xff]
    %v1023 = vld [vmem:[#allocation7 + $0xa0] sm:$0xff]
    %v1024 = vld [vmem:[#allocation7 + $0xa8] sm:$0xff]
    %v1025 = vld [vmem:[#allocation7 + $0xb0] sm:$0xff]
    %v1026 = vld [vmem:[#allocation7 + $0xb8] sm:$0xff]
    %v1027 = vld [vmem:[#allocation7 + $0xc0] sm:$0xff]
    %v1028 = vld [vmem:[#allocation7 + $0xc8] sm:$0xff]
    %v1029 = vld [vmem:[#allocation7 + $0xd0] sm:$0xff]
    %v1030 = vld [vmem:[#allocation7 + $0xd8] sm:$0xff]
    %v1031 = vld [vmem:[#allocation7 + $0xe0] sm:$0xff]
    %v1032 = vld [vmem:[#allocation7 + $0xe8] sm:$0xff]
    %v1033 = vld [vmem:[#allocation7 + $0xf0] sm:$0xff]
    %v1034 = vld [vmem:[#allocation7 + $0xf8] sm:$0xff]
    %v1067 = vunpack.c.l.b16 %v1003
    %v1068 = vunpack.c.h.b16 %v1003
    %v1069 = vunpack.c.l.b16 %v1004
    %v1070 = vunpack.c.h.b16 %v1004
    %v1071 = vunpack.c.l.b16 %v1005
    %v1072 = vunpack.c.h.b16 %v1005
    %v1073 = vunpack.c.l.b16 %v1006
    %v1074 = vunpack.c.h.b16 %v1006
    %v1075 = vunpack.c.l.b16 %v1007
    %v1076 = vunpack.c.h.b16 %v1007
    %v1077 = vunpack.c.l.b16 %v1008
    %v1078 = vunpack.c.h.b16 %v1008
    %v1079 = vunpack.c.l.b16 %v1009
    %v1080 = vunpack.c.h.b16 %v1009
    %v1081 = vunpack.c.l.b16 %v1010
    %v1082 = vunpack.c.h.b16 %v1010
    %v1083 = vunpack.c.l.b16 %v1011
    %v1084 = vunpack.c.h.b16 %v1011
    %v1085 = vunpack.c.l.b16 %v1012
    %v1086 = vunpack.c.h.b16 %v1012
    %v1087 = vunpack.c.l.b16 %v1013
    %v1088 = vunpack.c.h.b16 %v1013
    %v1089 = vunpack.c.l.b16 %v1014
    %v1090 = vunpack.c.h.b16 %v1014
    %v1091 = vunpack.c.l.b16 %v1015
    %v1092 = vunpack.c.h.b16 %v1015
    %v1093 = vunpack.c.l.b16 %v1016
    %v1094 = vunpack.c.h.b16 %v1016
    %v1095 = vunpack.c.l.b16 %v1017
    %v1096 = vunpack.c.h.b16 %v1017
    %v1097 = vunpack.c.l.b16 %v1018
    %v1098 = vunpack.c.h.b16 %v1018
    %v1099 = vunpack.c.l.b16 %v1019
    %v1100 = vunpack.c.h.b16 %v1019
    %v1101 = vunpack.c.l.b16 %v1020
    %v1102 = vunpack.c.h.b16 %v1020
    %v1103 = vunpack.c.l.b16 %v1021
    %v1104 = vunpack.c.h.b16 %v1021
    %v1105 = vunpack.c.l.b16 %v1022
    %v1106 = vunpack.c.h.b16 %v1022
    %v1107 = vunpack.c.l.b16 %v1023
    %v1108 = vunpack.c.h.b16 %v1023
    %v1109 = vunpack.c.l.b16 %v1024
    %v1110 = vunpack.c.h.b16 %v1024
    %v1111 = vunpack.c.l.b16 %v1025
    %v1112 = vunpack.c.h.b16 %v1025
    %v1113 = vunpack.c.l.b16 %v1026
    %v1114 = vunpack.c.h.b16 %v1026
    %v1115 = vunpack.c.l.b16 %v1027
    %v1116 = vunpack.c.h.b16 %v1027
    %v1117 = vunpack.c.l.b16 %v1028
    %v1118 = vunpack.c.h.b16 %v1028
    %v1119 = vunpack.c.l.b16 %v1029
    %v1120 = vunpack.c.h.b16 %v1029
    %v1121 = vunpack.c.l.b16 %v1030
    %v1122 = vunpack.c.h.b16 %v1030
    %v1123 = vunpack.c.l.b16 %v1031
    %v1124 = vunpack.c.h.b16 %v1031
    %v1125 = vunpack.c.l.b16 %v1032
    %v1126 = vunpack.c.h.b16 %v1032
    %v1127 = vunpack.c.l.b16 %v1033
    %v1128 = vunpack.c.h.b16 %v1033
    %v1129 = vunpack.c.l.b16 %v1034
    %v1130 = vunpack.c.h.b16 %v1034
    %v1131 = vpack.c.b16 %v1069, %v1067
    %v1132 = vpack.c.b16 %v1070, %v1068
    %v1133 = vpack.c.b16 %v1073, %v1071
    %v1134 = vpack.c.b16 %v1074, %v1072
    %v1135 = vpack.c.b16 %v1077, %v1075
    %v1136 = vpack.c.b16 %v1078, %v1076
    %v1137 = vpack.c.b16 %v1081, %v1079
    %v1138 = vpack.c.b16 %v1082, %v1080
    %v1139 = vpack.c.b16 %v1085, %v1083
    %v1140 = vpack.c.b16 %v1086, %v1084
    %v1141 = vpack.c.b16 %v1089, %v1087
    %v1142 = vpack.c.b16 %v1090, %v1088
    %v1143 = vpack.c.b16 %v1093, %v1091
    %v1144 = vpack.c.b16 %v1094, %v1092
    %v1145 = vpack.c.b16 %v1097, %v1095
    %v1146 = vpack.c.b16 %v1098, %v1096
    %v1147 = vpack.c.b16 %v1101, %v1099
    %v1148 = vpack.c.b16 %v1102, %v1100
    %v1149 = vpack.c.b16 %v1105, %v1103
    %v1150 = vpack.c.b16 %v1106, %v1104
    %v1151 = vpack.c.b16 %v1109, %v1107
    %v1152 = vpack.c.b16 %v1110, %v1108
    %v1153 = vpack.c.b16 %v1113, %v1111
    %v1154 = vpack.c.b16 %v1114, %v1112
    %v1155 = vpack.c.b16 %v1117, %v1115
    %v1156 = vpack.c.b16 %v1118, %v1116
    %v1157 = vpack.c.b16 %v1121, %v1119
    %v1158 = vpack.c.b16 %v1122, %v1120
    %v1159 = vpack.c.b16 %v1125, %v1123
    %v1160 = vpack.c.b16 %v1126, %v1124
    %v1161 = vpack.c.b16 %v1129, %v1127
    %v1162 = vpack.c.b16 %v1130, %v1128
    %1195 = vmatprep.subr.bf16.mxu0 %v1132
    %1196 = vmatpush1.bf16.msra.mxu0 %v1131
    %1197 = vmatprep.subr.bf16.mxu0 %v1134
    %1198 = vmatpush1.bf16.msra.mxu0 %v1133
    %1199 = vmatprep.subr.bf16.mxu0 %v1136
    %1200 = vmatpush1.bf16.msra.mxu0 %v1135
    %1201 = vmatprep.subr.bf16.mxu0 %v1138
    %1202 = vmatpush1.bf16.msra.mxu0 %v1137
    %1203 = vmatprep.subr.bf16.mxu0 %v1140
    %1204 = vmatpush1.bf16.msra.mxu0 %v1139
    %1205 = vmatprep.subr.bf16.mxu0 %v1142
    %1206 = vmatpush1.bf16.msra.mxu0 %v1141
    %1207 = vmatprep.subr.bf16.mxu0 %v1144
    %1208 = vmatpush1.bf16.msra.mxu0 %v1143
    %1209 = vmatprep.subr.bf16.mxu0 %v1146
    %1210 = vmatpush1.bf16.msra.mxu0 %v1145
    %1211 = vmatprep.subr.bf16.mxu0 %v1148
    %1212 = vmatpush1.bf16.msra.mxu0 %v1147
    %1213 = vmatprep.subr.bf16.mxu0 %v1150
    %1214 = vmatpush1.bf16.msra.mxu0 %v1149
    %1215 = vmatprep.subr.bf16.mxu0 %v1152
    %1216 = vmatpush1.bf16.msra.mxu0 %v1151
    %1217 = vmatprep.subr.bf16.mxu0 %v1154
    %1218 = vmatpush1.bf16.msra.mxu0 %v1153
    %1219 = vmatprep.subr.bf16.mxu0 %v1156
    %1220 = vmatpush1.bf16.msra.mxu0 %v1155
    %1221 = vmatprep.subr.bf16.mxu0 %v1158
    %1222 = vmatpush1.bf16.msra.mxu0 %v1157
    %1223 = vmatprep.subr.bf16.mxu0 %v1160
    %1224 = vmatpush1.bf16.msra.mxu0 %v1159
    %1225 = vmatprep.subr.bf16.mxu0 %v1162
    %1226 = vmatpush1.bf16.msra.mxu0 %v1161
    %1227 = vmatprep.mubr.bf16.mxu0 %v1002
    %1228 = vmatmul.mubr.bf16.gmra.mrb[0].mxu0 %v1001
    %v1229 = vpop.f32.mrb[0].mxu0
    %v1230 = vadd.f32 0.0, %v1229
    %v1231 = vpop.f32.mrb[0].mxu0
    %v1232 = vadd.f32 0.0, %v1231
    %v1233 = vpop.f32.mrb[0].mxu0
    %v1234 = vpop.f32.mrb[0].mxu0
    %1235 = vdwg.mxu0
    %s1236 = scalar_lea.vmem %s7, 4
    %v1237 = vld [vmem:[%s1236] ss:$8 sm:$0x3]
    %v1238 = vpack.c.bf16 %v1230, %v1230
    %v1239 = vpack.c.bf16 %v1232, %v1232
    %v1241 = vlaneseq
    %v1242 = vshrl.u32 %v1241, 7
    %v1243 = vsub.s32 0, %v1242
    %v1244 = vrot.slane %v1237, %v1243
    %v1245 = vlaneseq
    %v1246 = vshrl.u32 %v1245, 7
    %v1247 = vsub.s32 1, %v1246
    %v1248 = vrot.slane %v1237, %v1247
    %v1251 = vpack.c.bf16 %v1244, %v1244
    %v1252 = vpack.c.bf16 %v1248, %v1248
    %v1254 = vpack.i.b16 %v1251, %v1251
    %v1256 = vlaneseq
    %v1257 = vshrl.u32 %v1256, 7
    %v1258 = vsub.s32 0, %v1257
    %v1259 = vrot.slane %v1254, %v1258
    %v1261 = vpack.i.b16 %v1252, %v1252
    %v1263 = vlaneseq
    %v1264 = vshrl.u32 %v1263, 7
    %v1265 = vsub.s32 0, %v1264
    %v1266 = vrot.slane %v1261, %v1265
    %v1267 = vadd.bf16 %v1238, %v1259
    %v1268 = vadd.bf16 %v1239, %v1266
    %v1269 = vmul.bf16 %v1267, 1009007652
    %v1270 = vmul.bf16 %v1268, 1009007652
    %v1271 = vmax.bf16 %v1267, %v1269
    %v1272 = vmax.bf16 %v1268, %v1270
    %v1273 = vld [vmem:[#allocation9] sm:$0xf]
    %v1274 = vld [vmem:[#allocation9 + $0x4] sm:$0xf]
    %v1275 = vld [vmem:[#allocation9 + $0x8] sm:$0xf]
    %v1276 = vld [vmem:[#allocation9 + $0xc] sm:$0xf]
    %v1277 = vld [vmem:[#allocation9 + $0x10] sm:$0xf]
    %v1278 = vld [vmem:[#allocation9 + $0x14] sm:$0xf]
    %v1279 = vld [vmem:[#allocation9 + $0x18] sm:$0xf]
    %v1280 = vld [vmem:[#allocation9 + $0x1c] sm:$0xf]
    %v1281 = vld [vmem:[#allocation9 + $0x20] sm:$0xf]
    %v1282 = vld [vmem:[#allocation9 + $0x24] sm:$0xf]
    %v1283 = vld [vmem:[#allocation9 + $0x28] sm:$0xf]
    %v1284 = vld [vmem:[#allocation9 + $0x2c] sm:$0xf]
    %v1285 = vld [vmem:[#allocation9 + $0x30] sm:$0xf]
    %v1286 = vld [vmem:[#allocation9 + $0x34] sm:$0xf]
    %v1287 = vld [vmem:[#allocation9 + $0x38] sm:$0xf]
    %v1288 = vld [vmem:[#allocation9 + $0x3c] sm:$0xf]
    %v1289 = vld [vmem:[#allocation9 + $0x40] sm:$0xf]
    %v1290 = vld [vmem:[#allocation9 + $0x44] sm:$0xf]
    %v1291 = vld [vmem:[#allocation9 + $0x48] sm:$0xf]
    %v1292 = vld [vmem:[#allocation9 + $0x4c] sm:$0xf]
    %v1293 = vld [vmem:[#allocation9 + $0x50] sm:$0xf]
    %v1294 = vld [vmem:[#allocation9 + $0x54] sm:$0xf]
    %v1295 = vld [vmem:[#allocation9 + $0x58] sm:$0xf]
    %v1296 = vld [vmem:[#allocation9 + $0x5c] sm:$0xf]
    %v1297 = vld [vmem:[#allocation9 + $0x60] sm:$0xf]
    %v1298 = vld [vmem:[#allocation9 + $0x64] sm:$0xf]
    %v1299 = vld [vmem:[#allocation9 + $0x68] sm:$0xf]
    %v1300 = vld [vmem:[#allocation9 + $0x6c] sm:$0xf]
    %v1301 = vld [vmem:[#allocation9 + $0x70] sm:$0xf]
    %v1302 = vld [vmem:[#allocation9 + $0x74] sm:$0xf]
    %v1303 = vld [vmem:[#allocation9 + $0x78] sm:$0xf]
    %v1304 = vld [vmem:[#allocation9 + $0x7c] sm:$0xf]
    %v1305 = vld [vmem:[%s7 + $0x5] ss:$0 sm:$0xff]
    %v1338 = vunpack.c.l.b16 %v1273
    %v1339 = vunpack.c.l.b16 %v1274
    %v1340 = vunpack.c.l.b16 %v1275
    %v1341 = vunpack.c.l.b16 %v1276
    %v1342 = vunpack.c.l.b16 %v1277
    %v1343 = vunpack.c.l.b16 %v1278
    %v1344 = vunpack.c.l.b16 %v1279
    %v1345 = vunpack.c.l.b16 %v1280
    %v1346 = vunpack.c.l.b16 %v1281
    %v1347 = vunpack.c.l.b16 %v1282
    %v1348 = vunpack.c.l.b16 %v1283
    %v1349 = vunpack.c.l.b16 %v1284
    %v1350 = vunpack.c.l.b16 %v1285
    %v1351 = vunpack.c.l.b16 %v1286
    %v1352 = vunpack.c.l.b16 %v1287
    %v1353 = vunpack.c.l.b16 %v1288
    %v1354 = vunpack.c.l.b16 %v1289
    %v1355 = vunpack.c.l.b16 %v1290
    %v1356 = vunpack.c.l.b16 %v1291
    %v1357 = vunpack.c.l.b16 %v1292
    %v1358 = vunpack.c.l.b16 %v1293
    %v1359 = vunpack.c.l.b16 %v1294
    %v1360 = vunpack.c.l.b16 %v1295
    %v1361 = vunpack.c.l.b16 %v1296
    %v1362 = vunpack.c.l.b16 %v1297
    %v1363 = vunpack.c.l.b16 %v1298
    %v1364 = vunpack.c.l.b16 %v1299
    %v1365 = vunpack.c.l.b16 %v1300
    %v1366 = vunpack.c.l.b16 %v1301
    %v1367 = vunpack.c.l.b16 %v1302
    %v1368 = vunpack.c.l.b16 %v1303
    %v1369 = vunpack.c.l.b16 %v1304
    %v1370 = vpack.c.b16 %v1339, %v1338
    %v1371 = vpack.c.b16 %v1341, %v1340
    %v1372 = vpack.c.b16 %v1343, %v1342
    %v1373 = vpack.c.b16 %v1345, %v1344
    %v1374 = vpack.c.b16 %v1347, %v1346
    %v1375 = vpack.c.b16 %v1349, %v1348
    %v1376 = vpack.c.b16 %v1351, %v1350
    %v1377 = vpack.c.b16 %v1353, %v1352
    %v1378 = vpack.c.b16 %v1355, %v1354
    %v1379 = vpack.c.b16 %v1357, %v1356
    %v1380 = vpack.c.b16 %v1359, %v1358
    %v1381 = vpack.c.b16 %v1361, %v1360
    %v1382 = vpack.c.b16 %v1363, %v1362
    %v1383 = vpack.c.b16 %v1365, %v1364
    %v1384 = vpack.c.b16 %v1367, %v1366
    %v1385 = vpack.c.b16 %v1369, %v1368
    %1402 = vmatprep.subr.bf16.mxu0 0
    %1403 = vmatpush1.bf16.msra.mxu0 %v1370
    %1404 = vmatprep.subr.bf16.mxu0 0
    %1405 = vmatpush1.bf16.msra.mxu0 %v1371
    %1406 = vmatprep.subr.bf16.mxu0 0
    %1407 = vmatpush1.bf16.msra.mxu0 %v1372
    %1408 = vmatprep.subr.bf16.mxu0 0
    %1409 = vmatpush1.bf16.msra.mxu0 %v1373
    %1410 = vmatprep.subr.bf16.mxu0 0
    %1411 = vmatpush1.bf16.msra.mxu0 %v1374
    %1412 = vmatprep.subr.bf16.mxu0 0
    %1413 = vmatpush1.bf16.msra.mxu0 %v1375
    %1414 = vmatprep.subr.bf16.mxu0 0
    %1415 = vmatpush1.bf16.msra.mxu0 %v1376
    %1416 = vmatprep.subr.bf16.mxu0 0
    %1417 = vmatpush1.bf16.msra.mxu0 %v1377
    %1418 = vmatprep.subr.bf16.mxu0 0
    %1419 = vmatpush1.bf16.msra.mxu0 %v1378
    %1420 = vmatprep.subr.bf16.mxu0 0
    %1421 = vmatpush1.bf16.msra.mxu0 %v1379
    %1422 = vmatprep.subr.bf16.mxu0 0
    %1423 = vmatpush1.bf16.msra.mxu0 %v1380
    %1424 = vmatprep.subr.bf16.mxu0 0
    %1425 = vmatpush1.bf16.msra.mxu0 %v1381
    %1426 = vmatprep.subr.bf16.mxu0 0
    %1427 = vmatpush1.bf16.msra.mxu0 %v1382
    %1428 = vmatprep.subr.bf16.mxu0 0
    %1429 = vmatpush1.bf16.msra.mxu0 %v1383
    %1430 = vmatprep.subr.bf16.mxu0 0
    %1431 = vmatpush1.bf16.msra.mxu0 %v1384
    %1432 = vmatprep.subr.bf16.mxu0 0
    %1433 = vmatpush1.bf16.msra.mxu0 %v1385
    %1434 = vmatprep.mubr.bf16.mxu0 %v1272
    %1435 = vmatmul.mubr.bf16.gmra.mrb[0].mxu0 %v1271
    %v1436 = vpop.f32.mrb[0].mxu0
    %v1437 = vadd.f32 %v1305, %v1436
    %v1438 = vpop.f32.mrb[0].mxu0
    %v1439 = vpop.f32.mrb[0].mxu0
    %v1440 = vpop.f32.mrb[0].mxu0
    %1441 = vdwg.mxu0
    %v1442 = vmul.f32 %v1437, 0.01
    %v1443 = vmax.f32 %v1437, %v1442
    %v1444 = vpack.c.bf16 %v1443, %v1443
    %1445 = vst [vmem:[%s8] sm:$0xf] %v1444
    // Predicated region
    $region54: #{bp_forward.1} parent=1 // pred_check
      _
    $region55: #{bp_forward.1} parent=1 // pred_check_branch
      %1447 = sbr.rel (0) target = $region57
    $region56: #{bp_forward.1} parent=1 // pred_region
      _
    $region57: #{bp_forward.1} parent=1 // pred_fallthru
      _
    // Predicated region
    $region58: #{bp_forward.1} parent=1 // pred_check
      _
    $region59: #{bp_forward.1} parent=1 // pred_check_branch
      %1449 = sbr.rel (0) target = $region61
    $region60: #{bp_forward.1} parent=1 // pred_region
      _
    $region61: #{bp_forward.1} parent=1 // pred_fallthru
      _
    %1450 = vsyncpa [#allocation3], 1
    %1451 = vsyncpa [#allocation5], 1
    %1452 = vsyncpa [#allocation8], 1

</llo_original>
